<compile_context>
chip_gen: v6e
topology: v6e:2x2x1
jax: 0.10.0
libtpu: 0.0.40
codegen_flags: <defaults>
</compile_context>

<pallas_src>
import functools

import jax
import jax.numpy as jnp
from jax.experimental import pallas as pl
from jax.experimental.pallas import tpu as pltpu


def _round_up(x, m):
    return ((x + m - 1) // m) * m


def _softplus(x):
    # branch-free, numerically stable: max(x, 0) + log1p(exp(-|x|))
    return jnp.maximum(x, 0.0) + jnp.log1p(jnp.exp(-jnp.abs(x)))


def _params_kernel(x_ref, w1_ref, b1_ref, w2_ref, b2_ref, wh_ref, bh_ref,
                   out_ref, *, obs_dim):
    # Stage 1: single fused first-layer matmul over the pre-concatenated
    # [TB, obs_dim + act_dim] input (one K=d_in MXU pass, one input stream).
    h1 = jnp.dot(x_ref[...], w1_ref[...], preferred_element_type=jnp.float32)
    h1 = jnp.maximum(h1 + b1_ref[...], 0.0)            # f32 elementwise (v5e-safe)

    # Stage 2.
    h2 = jnp.dot(h1.astype(w2_ref.dtype), w2_ref[...],
                 preferred_element_type=jnp.float32) + b2_ref[...]
    h2 = jnp.maximum(h2, 0.0)

    # Stage 3: fused (loc | pre_scale | zero-pad) head -> one lane-dense matmul
    # and a single unmasked [TB, P] store (P = minimal multiple of 128).
    head = jnp.dot(h2.astype(wh_ref.dtype), wh_ref[...],
                   preferred_element_type=jnp.float32) + bh_ref[...]

    # Column mask as a (1, P) iota broadcast over rows (cheaper than (TB, P)).
    col = jax.lax.broadcasted_iota(jnp.int32, (1, head.shape[1]), 1)
    is_scale = (col >= obs_dim) & (col < 2 * obs_dim)
    out_ref[...] = jnp.where(is_scale, _softplus(head), head).astype(out_ref.dtype)


def _choose_batch_tile(B):
    """Large batch tiles to amortize the ~0.35us per-grid-step overhead.

    - Small batches: one grid step (splitting tiny work is pure overhead).
    - Large batches: >= 2 grid steps so the 'parallel' axis shards across both
      v7x TensorCores, tile capped at 2048 rows (f32 [2048,128] output + f32
      temporaries stay well inside v5e's 16 MiB default scoped-VMEM limit).
    """
    if B <= 512:
        return B
    return min(2048, _round_up(pl.cdiv(B, 2), 128))


def params_mlp_pallas(x, w1, b1, w2, b2, wh, bh, *, obs_dim,
                      out_dtype=jnp.float32):
    """Batch-tiled Pallas call; weights stay VMEM-resident across grid steps."""
    B = x.shape[0]
    P = wh.shape[1]
    TB = _choose_batch_tile(B)
    grid = (pl.cdiv(B, TB),)

    def resident(a):
        # Constant index_map -> block fetched once and kept VMEM-resident
        # across grid steps (Pallas skips re-DMA when the block index repeats).
        return pl.BlockSpec(a.shape, lambda i: (0,) * a.ndim)

    kernel = functools.partial(_params_kernel, obs_dim=obs_dim)
    out = pl.pallas_call(
        kernel,
        out_shape=jax.ShapeDtypeStruct((B, P), out_dtype),
        grid=grid,
        in_specs=[
            pl.BlockSpec((TB, x.shape[1]), lambda i: (i, 0)),
            resident(w1), resident(b1),
            resident(w2), resident(b2),
            resident(wh), resident(bh),
        ],
        out_specs=pl.BlockSpec((TB, P), lambda i: (i, 0)),
        compiler_params=pltpu.CompilerParams(
            dimension_semantics=("parallel",)),
    )(x, w1, b1, w2, b2, wh, bh)
    return out


@functools.partial(jax.jit, static_argnames=("obs_dim", "out_dtype"))
def _forward_impl(obs, action, w1, b1, w2, b2, wh, bh, *, obs_dim, out_dtype):
    # Pre-concat (trivial HBM traffic, fuses under this jit) so the kernel runs
    # one K=d_in matmul instead of two tiny ones.
    x = jnp.concatenate([obs, action], axis=-1).astype(w1.dtype)
    fused = params_mlp_pallas(x, w1, b1, w2, b2, wh, bh,
                              obs_dim=obs_dim, out_dtype=out_dtype)
    # Slices live under the same jit -> they fuse with downstream consumers
    # instead of re-reading the full [B, P] slab from HBM.
    loc = fused[:, :obs_dim]
    scale = fused[:, obs_dim:2 * obs_dim]
    return loc, scale


class ResidualStochasticModelPallas:
    """JAX/Pallas port of ResidualStochasticModel.forward."""

    def __init__(self, obs_dim, act_dim, hidden, key, *,
                 mxu_dtype=jnp.bfloat16, out_dtype=jnp.float32):
        self.obs_dim = obs_dim
        self.act_dim = act_dim
        self.mxu_dtype = mxu_dtype
        # out_dtype=jnp.bfloat16 halves the dominant [B,128] output store if the
        # consumer tolerates bf16 loc/scale; default f32 matches the original.
        self.out_dtype = out_dtype
        ks = jax.random.split(key, 4)
        d_in = obs_dim + act_dim
        init = lambda k, shape, fan_in: (
            jax.random.normal(k, shape, jnp.float32) / jnp.sqrt(fan_in))

        # Single first-layer weight over the concatenated (obs, action) input.
        self.w1 = init(ks[0], (d_in, hidden), d_in).astype(mxu_dtype)
        self.b1 = jnp.zeros((1, hidden), jnp.float32)

        self.w2 = init(ks[1], (hidden, hidden), hidden).astype(mxu_dtype)
        self.b2 = jnp.zeros((1, hidden), jnp.float32)

        # Fused + minimally lane-padded head:
        # cols [0:obs_dim]=loc, [obs_dim:2*obs_dim]=scale, rest zero-pad.
        self.head_pad = _round_up(2 * obs_dim, 128)
        wl = init(ks[2], (hidden, obs_dim), hidden)
        ws = init(ks[3], (hidden, obs_dim), hidden)
        wh = jnp.zeros((hidden, self.head_pad), jnp.float32)
        wh = wh.at[:, :obs_dim].set(wl).at[:, obs_dim:2 * obs_dim].set(ws)
        self.wh = wh.astype(mxu_dtype)
        self.bh = jnp.zeros((1, self.head_pad), jnp.float32)

    def forward(self, obs, action):
        loc, scale = _forward_impl(
            obs, action, self.w1, self.b1, self.w2, self.b2, self.wh, self.bh,
            obs_dim=self.obs_dim, out_dtype=self.out_dtype)
        # ResidualStochasticModel.forward: attach obs to the params dict (no compute).
        return {"loc": loc, "scale": scale, "obs": obs}

    # TODO(synk): sample/rsample/log_prob/cdf/icdf/entropy/reproduce/deterministic
    # depend on the external ConditionalDistribution module (RNG + density math);
    # only the forward hot path is kernelized here.


def _reference_forward(model, obs, action):
    """Pure-JAX reference mimicking the kernel's bf16-operand / f32-accumulate math."""
    f32 = jnp.float32
    hp = jax.lax.Precision.HIGHEST
    x = jnp.concatenate([obs, action], axis=-1).astype(model.mxu_dtype).astype(f32)
    h1 = jnp.maximum(
        jnp.dot(x, model.w1.astype(f32), precision=hp) + model.b1, 0.0)
    h1 = h1.astype(model.mxu_dtype).astype(f32)
    h2 = jnp.maximum(
        jnp.dot(h1, model.w2.astype(f32), precision=hp) + model.b2, 0.0)
    h2 = h2.astype(model.mxu_dtype).astype(f32)
    head = jnp.dot(h2, model.wh.astype(f32), precision=hp) + model.bh
    loc = head[:, :model.obs_dim]
    scale = jax.nn.softplus(head[:, model.obs_dim:2 * model.obs_dim])
    return loc, scale


if __name__ == "__main__":
    key = jax.random.PRNGKey(0)
    k_obs, k_act, k_model = jax.random.split(key, 3)

    B, OBS_DIM, ACT_DIM, HIDDEN = 8, 16, 8, 32
    obs = jax.random.normal(k_obs, (B, OBS_DIM), jnp.float32)
    action = jax.random.normal(k_act, (B, ACT_DIM), jnp.float32)

    model = ResidualStochasticModelPallas(OBS_DIM, ACT_DIM, HIDDEN, k_model)
    params = model.forward(obs, action)
    jax.block_until_ready(params)

    # sanity check against pure-JAX reference (same precision regime)
    ref_loc, ref_scale = _reference_forward(model, obs, action)
    assert params["loc"].shape == (B, OBS_DIM)
    assert params["scale"].shape == (B, OBS_DIM)
    assert params["obs"].shape == (B, OBS_DIM)
    assert jnp.allclose(params["loc"], ref_loc, atol=1e-3, rtol=1e-3)
    assert jnp.allclose(params["scale"], ref_scale, atol=1e-3, rtol=1e-3)
    assert jnp.array_equal(params["obs"], obs)

    print("KERNEL_OK")
</pallas_src>

<mosaic_0001>
module attributes {stable_mosaic.version = 11 : i64} {
  func.func @_params_kernel(%arg0: i32, %arg1: memref<8x24xbf16, #tpu.memory_space<vmem>>, %arg2: memref<24x32xbf16, #tpu.memory_space<vmem>>, %arg3: memref<1x32xf32, #tpu.memory_space<vmem>>, %arg4: memref<32x32xbf16, #tpu.memory_space<vmem>>, %arg5: memref<1x32xf32, #tpu.memory_space<vmem>>, %arg6: memref<32x128xbf16, #tpu.memory_space<vmem>>, %arg7: memref<1x128xf32, #tpu.memory_space<vmem>>, %arg8: memref<8x128xf32, #tpu.memory_space<vmem>>) attributes {dimension_semantics = [#tpu.dimension_semantics<parallel>], iteration_bounds = array<i64: 1>, scalar_prefetch = 0 : i64, scratch_operands = 0 : i64, tpu.core_type = #tpu.core_type<tc>, window_params = [{transform_indices = @transform_0, window_bounds = array<i64: 8, 24>}, {pipeline_mode = #tpu.pipeline_mode<synchronous>, transform_indices = @transform_1, window_bounds = array<i64: 24, 32>}, {pipeline_mode = #tpu.pipeline_mode<synchronous>, transform_indices = @transform_2, window_bounds = array<i64: 1, 32>}, {pipeline_mode = #tpu.pipeline_mode<synchronous>, transform_indices = @transform_3, window_bounds = array<i64: 32, 32>}, {pipeline_mode = #tpu.pipeline_mode<synchronous>, transform_indices = @transform_4, window_bounds = array<i64: 1, 32>}, {pipeline_mode = #tpu.pipeline_mode<synchronous>, transform_indices = @transform_5, window_bounds = array<i64: 32, 128>}, {pipeline_mode = #tpu.pipeline_mode<synchronous>, transform_indices = @transform_6, window_bounds = array<i64: 1, 128>}, {transform_indices = @transform_7, window_bounds = array<i64: 8, 128>}]} {
    %c0 = arith.constant 0 : index
    %c0_0 = arith.constant 0 : index
    %0 = vector.load %arg1[%c0, %c0_0] : memref<8x24xbf16, #tpu.memory_space<vmem>>, vector<8x24xbf16>
    %c0_1 = arith.constant 0 : index
    %c0_2 = arith.constant 0 : index
    %1 = vector.load %arg2[%c0_1, %c0_2] : memref<24x32xbf16, #tpu.memory_space<vmem>>, vector<24x32xbf16>
    %cst = arith.constant dense<0.000000e+00> : vector<8x32xf32>
    %2 = tpu.matmul %0, %1, %cst {dimension_numbers = #tpu.dot_dimension_numbers<[1], [0], [0], [1], [0, 0, 1, 1], [], []>} : vector<8x24xbf16>, vector<24x32xbf16>, vector<8x32xf32> -> vector<8x32xf32>
    %c0_3 = arith.constant 0 : index
    %c0_4 = arith.constant 0 : index
    %3 = vector.load %arg3[%c0_3, %c0_4] : memref<1x32xf32, #tpu.memory_space<vmem>>, vector<1x32xf32>
    %4 = vector.broadcast %3 : vector<1x32xf32> to vector<8x32xf32>
    %5 = arith.addf %2, %4 : vector<8x32xf32>
    %cst_5 = arith.constant 0.000000e+00 : f32
    %6 = vector.broadcast %cst_5 : f32 to vector<8x32xf32>
    %7 = arith.maximumf %5, %6 : vector<8x32xf32>
    %8 = arith.truncf %7 : vector<8x32xf32> to vector<8x32xbf16>
    %c0_6 = arith.constant 0 : index
    %c0_7 = arith.constant 0 : index
    %9 = vector.load %arg4[%c0_6, %c0_7] : memref<32x32xbf16, #tpu.memory_space<vmem>>, vector<32x32xbf16>
    %cst_8 = arith.constant dense<0.000000e+00> : vector<8x32xf32>
    %10 = tpu.matmul %8, %9, %cst_8 {dimension_numbers = #tpu.dot_dimension_numbers<[1], [0], [0], [1], [0, 0, 1, 1], [], []>} : vector<8x32xbf16>, vector<32x32xbf16>, vector<8x32xf32> -> vector<8x32xf32>
    %c0_9 = arith.constant 0 : index
    %c0_10 = arith.constant 0 : index
    %11 = vector.load %arg5[%c0_9, %c0_10] : memref<1x32xf32, #tpu.memory_space<vmem>>, vector<1x32xf32>
    %12 = vector.broadcast %11 : vector<1x32xf32> to vector<8x32xf32>
    %13 = arith.addf %10, %12 : vector<8x32xf32>
    %cst_11 = arith.constant 0.000000e+00 : f32
    %14 = vector.broadcast %cst_11 : f32 to vector<8x32xf32>
    %15 = arith.maximumf %13, %14 : vector<8x32xf32>
    %16 = arith.truncf %15 : vector<8x32xf32> to vector<8x32xbf16>
    %c0_12 = arith.constant 0 : index
    %c0_13 = arith.constant 0 : index
    %17 = vector.load %arg6[%c0_12, %c0_13] : memref<32x128xbf16, #tpu.memory_space<vmem>>, vector<32x128xbf16>
    %cst_14 = arith.constant dense<0.000000e+00> : vector<8x128xf32>
    %18 = tpu.matmul %16, %17, %cst_14 {dimension_numbers = #tpu.dot_dimension_numbers<[1], [0], [0], [1], [0, 0, 1, 1], [], []>} : vector<8x32xbf16>, vector<32x128xbf16>, vector<8x128xf32> -> vector<8x128xf32>
    %c0_15 = arith.constant 0 : index
    %c0_16 = arith.constant 0 : index
    %19 = vector.load %arg7[%c0_15, %c0_16] : memref<1x128xf32, #tpu.memory_space<vmem>>, vector<1x128xf32>
    %20 = vector.broadcast %19 : vector<1x128xf32> to vector<8x128xf32>
    %21 = arith.addf %18, %20 : vector<8x128xf32>
    %22 = tpu.iota {dimensions = array<i32: 1>} : vector<1x128xi32>
    %c16_i32 = arith.constant 16 : i32
    %23 = vector.broadcast %c16_i32 : i32 to vector<1x128xi32>
    %24 = arith.cmpi sge, %22, %23 : vector<1x128xi32>
    %c32_i32 = arith.constant 32 : i32
    %25 = vector.broadcast %c32_i32 : i32 to vector<1x128xi32>
    %26 = arith.cmpi slt, %22, %25 : vector<1x128xi32>
    %27 = arith.andi %24, %26 : vector<1x128xi1>
    %cst_17 = arith.constant 0.000000e+00 : f32
    %28 = vector.broadcast %cst_17 : f32 to vector<8x128xf32>
    %29 = arith.maximumf %21, %28 : vector<8x128xf32>
    %30 = math.absf %21 : vector<8x128xf32>
    %cst_18 = arith.constant 0.000000e+00 : f32
    %31 = vector.broadcast %cst_18 : f32 to vector<8x128xf32>
    %32 = arith.subf %31, %30 : vector<8x128xf32>
    %33 = math.exp %32 : vector<8x128xf32>
    %34 = math.log1p %33 : vector<8x128xf32>
    %35 = arith.addf %29, %34 : vector<8x128xf32>
    %36 = vector.shape_cast %27 : vector<1x128xi1> to vector<1x128xi1>
    %37 = vector.broadcast %36 : vector<1x128xi1> to vector<8x128xi1>
    %38 = arith.select %37, %35, %21 : vector<8x128xi1>, vector<8x128xf32>
    %c0_19 = arith.constant 0 : index
    %c0_20 = arith.constant 0 : index
    %39 = vector.load %arg8[%c0_19, %c0_20] : memref<8x128xf32, #tpu.memory_space<vmem>>, vector<8x128xf32>
    tpu.vector_store %arg8[%c0_19, %c0_20], %38 {strides = array<i32>} : memref<8x128xf32, #tpu.memory_space<vmem>>, vector<8x128xf32>,
    return
  }
  func.func @transform_0(%arg0: i32) -> (i32, i32) {
    %c0_i32 = arith.constant 0 : i32
    %c0_i32_0 = arith.constant 0 : i32
    return %arg0, %c0_i32 : i32, i32
  }
  func.func @transform_1(%arg0: i32) -> (i32, i32) {
    %c0_i32 = arith.constant 0 : i32
    %c0_i32_0 = arith.constant 0 : i32
    %c0_i32_1 = arith.constant 0 : i32
    return %c0_i32, %c0_i32_0 : i32, i32
  }
  func.func @transform_2(%arg0: i32) -> (i32, i32) {
    %c0_i32 = arith.constant 0 : i32
    %c0_i32_0 = arith.constant 0 : i32
    %c0_i32_1 = arith.constant 0 : i32
    return %c0_i32, %c0_i32_0 : i32, i32
  }
  func.func @transform_3(%arg0: i32) -> (i32, i32) {
    %c0_i32 = arith.constant 0 : i32
    %c0_i32_0 = arith.constant 0 : i32
    %c0_i32_1 = arith.constant 0 : i32
    return %c0_i32, %c0_i32_0 : i32, i32
  }
  func.func @transform_4(%arg0: i32) -> (i32, i32) {
    %c0_i32 = arith.constant 0 : i32
    %c0_i32_0 = arith.constant 0 : i32
    %c0_i32_1 = arith.constant 0 : i32
    return %c0_i32, %c0_i32_0 : i32, i32
  }
  func.func @transform_5(%arg0: i32) -> (i32, i32) {
    %c0_i32 = arith.constant 0 : i32
    %c0_i32_0 = arith.constant 0 : i32
    %c0_i32_1 = arith.constant 0 : i32
    return %c0_i32, %c0_i32_0 : i32, i32
  }
  func.func @transform_6(%arg0: i32) -> (i32, i32) {
    %c0_i32 = arith.constant 0 : i32
    %c0_i32_0 = arith.constant 0 : i32
    %c0_i32_1 = arith.constant 0 : i32
    return %c0_i32, %c0_i32_0 : i32, i32
  }
  func.func @transform_7(%arg0: i32) -> (i32, i32) {
    %c0_i32 = arith.constant 0 : i32
    %c0_i32_0 = arith.constant 0 : i32
    return %arg0, %c0_i32 : i32, i32
  }
}

</mosaic_0001>

<llo_original>
// kernel: _forward_impl.1
$region0: #{_forward_impl.1}
  #allocation0 [shape = 'u32[]', space=smem, size = 0x4, offset = 0x4, fixed_abs, tag = 'smem constant byte address 0x4 - core index']
  #allocation1 [shape = 'u32[144,128]{1,0:T(1,128)}', space=vmem, size = 0x12000, scoped, tag = 'internal scratch']
  %s0 = inlined_call_operand.vmem [shape: bf16[8,24], index: 0, kind: input, shape index: {}]
  %s1 = inlined_call_operand.hbm [shape: bf16[24,32], index: 1, kind: input, shape index: {}]
  %s2 = inlined_call_operand.vmem [shape: f32[1,32], index: 2, kind: input, shape index: {}]
  %s3 = inlined_call_operand.vmem [shape: bf16[32,32], index: 3, kind: input, shape index: {}]
  %s4 = inlined_call_operand.vmem [shape: f32[1,32], index: 4, kind: input, shape index: {}]
  %s5 = inlined_call_operand.vmem [shape: bf16[32,128], index: 5, kind: input, shape index: {}]
  %s6 = inlined_call_operand.vmem [shape: f32[1,128], index: 6, kind: input, shape index: {}]
  %s7 = inlined_call_operand.vmem [shape: f32[8,128], index: 7, kind: output, shape index: {}]
  %s8 = sld [smem:[#allocation0]]
  $region42: #{_forward_impl.1} parent=0
    _
  %s10 = ssub.s32 1, %s8
  %s11 = scalar_select 0, %s10, %s8
  $region1: #{_forward_impl.1} parent=0
    #allocation2 [shape = 'u8[6144]{0}', space=vmem, size = 0x1800, scoped, tag = 'input window, operand 1, single buffered']
    #allocation3 [shape = 's32[1]{0}', space=sflag, size = 0x4, scoped, tag = 'scoped memory for _forward_impl.1']
    %12 = vsyncpa [#allocation3], 0
    // Predicated region
    $region2: #{_forward_impl.1} parent=1 // pred_check
      _
    $region3: #{_forward_impl.1} parent=1 // pred_check_branch
      %14 = sbr.rel (0) target = $region5
    $region4: #{_forward_impl.1} parent=1 // pred_region
      _
    $region5: #{_forward_impl.1} parent=1 // pred_fallthru
      _
    // Predicated region
    $region6: #{_forward_impl.1} parent=1 // pred_check
      _
    $region7: #{_forward_impl.1} parent=1 // pred_check_branch
      %16 = sbr.rel (0) target = $region9
    $region8: #{_forward_impl.1} parent=1 // pred_region
      %s18 = ssub.s32 192, 192
      %19 = vsyncadd [#allocation3], %s18
      %s20 = sshll.u32 [#allocation2], 4
      %s21 = int_to_ptr.vmem [resolvable:$true] %s20
      %26 = dma.hbm_to_vmem [thread:$0]  %s1, 192, %s21, [#allocation3], 64, 64, 4
    $region9: #{_forward_impl.1} parent=1 // pred_fallthru
      _
    // Predicated region
    $region10: #{_forward_impl.1} parent=1 // pred_check
      _
    $region11: #{_forward_impl.1} parent=1 // pred_check_branch
      %28 = sbr.rel (0) target = $region13
    $region12: #{_forward_impl.1} parent=1 // pred_region
      _
    $region13: #{_forward_impl.1} parent=1 // pred_fallthru
      _
    // Predicated region
    $region14: #{_forward_impl.1} parent=1 // pred_check
      _
    $region15: #{_forward_impl.1} parent=1 // pred_check_branch
      %30 = sbr.rel (0) target = $region17
    $region16: #{_forward_impl.1} parent=1 // pred_region
      _
    $region17: #{_forward_impl.1} parent=1 // pred_fallthru
      _
    // Predicated region
    $region18: #{_forward_impl.1} parent=1 // pred_check
      _
    $region19: #{_forward_impl.1} parent=1 // pred_check_branch
      %32 = sbr.rel (0) target = $region21
    $region20: #{_forward_impl.1} parent=1 // pred_region
      _
    $region21: #{_forward_impl.1} parent=1 // pred_fallthru
      _
    // Predicated region
    $region22: #{_forward_impl.1} parent=1 // pred_check
      _
    $region23: #{_forward_impl.1} parent=1 // pred_check_branch
      %34 = sbr.rel (0) target = $region25
    $region24: #{_forward_impl.1} parent=1 // pred_region
      _
    $region25: #{_forward_impl.1} parent=1 // pred_fallthru
      _
    // Predicated region
    $region26: #{_forward_impl.1} parent=1 // pred_check
      _
    $region27: #{_forward_impl.1} parent=1 // pred_check_branch
      %36 = sbr.rel (0) target = $region29
    $region28: #{_forward_impl.1} parent=1 // pred_region
      _
    $region29: #{_forward_impl.1} parent=1 // pred_fallthru
      _
    // Predicated region
    $region30: #{_forward_impl.1} parent=1 // pred_check
      _
    $region31: #{_forward_impl.1} parent=1 // pred_check_branch
      %38 = sbr.rel (0) target = $region33
    $region32: #{_forward_impl.1} parent=1 // pred_region
      %39 = dma.done [#allocation3], 192
    $region33: #{_forward_impl.1} parent=1 // pred_fallthru
      _
    %v41 = vld [vmem:[%s0] sm:$0xf]
    %v42 = vld [vmem:[#allocation2] sm:$0xf]
    %v43 = vld [vmem:[#allocation2 + $0x4] sm:$0xf]
    %v44 = vld [vmem:[#allocation2 + $0x8] sm:$0xf]
    %v45 = vld [vmem:[%s2] sm:$0x1]
    %v47 = vlaneseq
    %v48 = vshrl.u32 %v47, 7
    %v49 = vsub.s32 0, %v48
    %v50 = vrot.slane %v45, %v49
    %v55 = vunpack.c.l.b16 %v42
    %v56 = vunpack.c.l.b16 %v43
    %v57 = vunpack.c.l.b16 %v44
    %v58 = vpack.c.b16 %v56, %v55
    %v59 = vpack.c.b16 %v57, %v57
    %vm61 = vcmask 195584
    %v63 = vsel %vm61, %v41, 0
    %vm65 = vcmask 1043456
    %v67 = vsel %vm65, %v59, 0
    %69 = vmatprep.subr.bf16.mxu0 0
    %70 = vmatpush1.bf16.msra.mxu0 0
    %71 = vmatprep.subr.bf16.mxu0 0
    %72 = vmatpush1.bf16.msra.mxu0 0
    %73 = vmatprep.subr.bf16.mxu0 0
    %74 = vmatpush1.bf16.msra.mxu0 0
    %75 = vmatprep.subr.bf16.mxu0 0
    %76 = vmatpush1.bf16.msra.mxu0 0
    %77 = vmatprep.subr.bf16.mxu0 0
    %78 = vmatpush1.bf16.msra.mxu0 0
    %79 = vmatprep.subr.bf16.mxu0 0
    %80 = vmatpush1.bf16.msra.mxu0 0
    %81 = vmatprep.subr.bf16.mxu0 0
    %82 = vmatpush1.bf16.msra.mxu0 %v67
    %83 = vmatprep.subr.bf16.mxu0 0
    %84 = vmatpush1.bf16.msra.mxu0 %v58
    %85 = vmatprep.subr.bf16.mxu0 0
    %86 = vmatpush2.bf16.msra.mxu0 0
    %87 = vmatprep.subr.bf16.mxu0 0
    %88 = vmatpush2.bf16.msra.mxu0 0
    %89 = vmatprep.subr.bf16.mxu0 0
    %90 = vmatpush2.bf16.msra.mxu0 0
    %91 = vmatprep.subr.bf16.mxu0 0
    %92 = vmatpush2.bf16.msra.mxu0 0
    %93 = vmatprep.subr.bf16.mxu0 0
    %94 = vmatpush2.bf16.msra.mxu0 0
    %95 = vmatprep.subr.bf16.mxu0 0
    %96 = vmatpush2.bf16.msra.mxu0 0
    %97 = vmatprep.subr.bf16.mxu0 0
    %98 = vmatpush2.bf16.msra.mxu0 0
    %99 = vmatprep.subr.bf16.mxu0 0
    %100 = vmatpush2.bf16.msra.mxu0 0
    %101 = vmatprep.mubr.bf16.mxu0 0
    %102 = vmatmul.mubr.bf16.gmra.mxu0 %v63
    %v103 = vpop.f32.mrf.mxu0
    %v104 = vadd.f32 %v50, %v103
    %v105 = vpop.f32.mrf.mxu0
    %v106 = vpop.f32.mrf.mxu0
    %v107 = vpop.f32.mrf.mxu0
    %108 = vdwg.mxu0
    %v109 = vmax.f32 %v104, 0.0
    %v110 = vpack.c.bf16 %v109, %v109
    %v111 = vld [vmem:[%s3] sm:$0xf]
    %v112 = vld [vmem:[%s3 + $0x4] sm:$0xf]
    %v113 = vld [vmem:[%s3 + $0x8] sm:$0xf]
    %v114 = vld [vmem:[%s3 + $0xc] sm:$0xf]
    %v115 = vld [vmem:[%s4] sm:$0x1]
    %v117 = vlaneseq
    %v118 = vshrl.u32 %v117, 7
    %v119 = vsub.s32 0, %v118
    %v120 = vrot.slane %v115, %v119
    %v126 = vunpack.c.l.b16 %v111
    %v127 = vunpack.c.l.b16 %v112
    %v128 = vunpack.c.l.b16 %v113
    %v129 = vunpack.c.l.b16 %v114
    %v130 = vpack.c.b16 %v127, %v126
    %v131 = vpack.c.b16 %v129, %v128
    %vm134 = vcmask 261120
    %v136 = vsel %vm134, %v110, 0
    %138 = vmatprep.subr.bf16.mxu0 0
    %139 = vmatpush1.bf16.msra.mxu0 0
    %140 = vmatprep.subr.bf16.mxu0 0
    %141 = vmatpush1.bf16.msra.mxu0 0
    %142 = vmatprep.subr.bf16.mxu0 0
    %143 = vmatpush1.bf16.msra.mxu0 0
    %144 = vmatprep.subr.bf16.mxu0 0
    %145 = vmatpush1.bf16.msra.mxu0 0
    %146 = vmatprep.subr.bf16.mxu0 0
    %147 = vmatpush1.bf16.msra.mxu0 0
    %148 = vmatprep.subr.bf16.mxu0 0
    %149 = vmatpush1.bf16.msra.mxu0 0
    %150 = vmatprep.subr.bf16.mxu0 0
    %151 = vmatpush1.bf16.msra.mxu0 %v131
    %152 = vmatprep.subr.bf16.mxu0 0
    %153 = vmatpush1.bf16.msra.mxu0 %v130
    %154 = vmatprep.subr.bf16.mxu0 0
    %155 = vmatpush2.bf16.msra.mxu0 0
    %156 = vmatprep.subr.bf16.mxu0 0
    %157 = vmatpush2.bf16.msra.mxu0 0
    %158 = vmatprep.subr.bf16.mxu0 0
    %159 = vmatpush2.bf16.msra.mxu0 0
    %160 = vmatprep.subr.bf16.mxu0 0
    %161 = vmatpush2.bf16.msra.mxu0 0
    %162 = vmatprep.subr.bf16.mxu0 0
    %163 = vmatpush2.bf16.msra.mxu0 0
    %164 = vmatprep.subr.bf16.mxu0 0
    %165 = vmatpush2.bf16.msra.mxu0 0
    %166 = vmatprep.subr.bf16.mxu0 0
    %167 = vmatpush2.bf16.msra.mxu0 0
    %168 = vmatprep.subr.bf16.mxu0 0
    %169 = vmatpush2.bf16.msra.mxu0 0
    %170 = vmatprep.mubr.bf16.mxu0 0
    %171 = vmatmul.mubr.bf16.gmra.mxu0 %v136
    %v172 = vpop.f32.mrf.mxu0
    %v173 = vadd.f32 %v120, %v172
    %v174 = vpop.f32.mrf.mxu0
    %v175 = vpop.f32.mrf.mxu0
    %v176 = vpop.f32.mrf.mxu0
    %177 = vdwg.mxu0
    %v178 = vmax.f32 %v173, 0.0
    %v179 = vpack.c.bf16 %v178, %v178
    %v180 = vld [vmem:[%s5] sm:$0xf]
    %v181 = vld [vmem:[%s5 + $0x4] sm:$0xf]
    %v182 = vld [vmem:[%s5 + $0x8] sm:$0xf]
    %v183 = vld [vmem:[%s5 + $0xc] sm:$0xf]
    %v184 = vld [vmem:[%s6] sm:$0x1]
    %v186 = vlaneseq
    %v187 = vshrl.u32 %v186, 7
    %v188 = vsub.s32 0, %v187
    %v189 = vrot.slane %v184, %v188
    %v195 = vunpack.c.l.b16 %v180
    %v196 = vunpack.c.l.b16 %v181
    %v197 = vunpack.c.l.b16 %v182
    %v198 = vunpack.c.l.b16 %v183
    %v199 = vpack.c.b16 %v196, %v195
    %v200 = vpack.c.b16 %v198, %v197
    %v204 = vsel %vm134, %v179, 0
    %206 = vmatprep.subr.bf16.mxu0 0
    %207 = vmatpush1.bf16.msra.mxu0 0
    %208 = vmatprep.subr.bf16.mxu0 0
    %209 = vmatpush1.bf16.msra.mxu0 0
    %210 = vmatprep.subr.bf16.mxu0 0
    %211 = vmatpush1.bf16.msra.mxu0 0
    %212 = vmatprep.subr.bf16.mxu0 0
    %213 = vmatpush1.bf16.msra.mxu0 0
    %214 = vmatprep.subr.bf16.mxu0 0
    %215 = vmatpush1.bf16.msra.mxu0 0
    %216 = vmatprep.subr.bf16.mxu0 0
    %217 = vmatpush1.bf16.msra.mxu0 0
    %218 = vmatprep.subr.bf16.mxu0 0
    %219 = vmatpush1.bf16.msra.mxu0 %v200
    %220 = vmatprep.subr.bf16.mxu0 0
    %221 = vmatpush1.bf16.msra.mxu0 %v199
    %222 = vmatprep.subr.bf16.mxu0 0
    %223 = vmatpush2.bf16.msra.mxu0 0
    %224 = vmatprep.subr.bf16.mxu0 0
    %225 = vmatpush2.bf16.msra.mxu0 0
    %226 = vmatprep.subr.bf16.mxu0 0
    %227 = vmatpush2.bf16.msra.mxu0 0
    %228 = vmatprep.subr.bf16.mxu0 0
    %229 = vmatpush2.bf16.msra.mxu0 0
    %230 = vmatprep.subr.bf16.mxu0 0
    %231 = vmatpush2.bf16.msra.mxu0 0
    %232 = vmatprep.subr.bf16.mxu0 0
    %233 = vmatpush2.bf16.msra.mxu0 0
    %234 = vmatprep.subr.bf16.mxu0 0
    %235 = vmatpush2.bf16.msra.mxu0 0
    %236 = vmatprep.subr.bf16.mxu0 0
    %237 = vmatpush2.bf16.msra.mxu0 0
    %238 = vmatprep.mubr.bf16.mxu0 0
    %239 = vmatmul.mubr.bf16.gmra.mxu0 %v204
    %v240 = vpop.f32.mrf.mxu0
    %v241 = vadd.f32 %v189, %v240
    %v242 = vpop.f32.mrf.mxu0
    %v243 = vpop.f32.mrf.mxu0
    %v244 = vpop.f32.mrf.mxu0
    %245 = vdwg.mxu0
    %v246 = vlaneseq
    %v247 = vand.u32 %v246, 127
    %vm248 = vcmp.ge.s32.totalorder %v247, 16
    %vm249 = vcmp.lt.s32.totalorder %v247, 32
    %vm250 = vmand %vm248, %vm249
    %v251 = vmax.f32 %v241, 0.0
    %v252 = vand.u32 2147483647, %v241
    %v253 = vsub.f32 0.0, %v252
    %v254 = vmul.f32 %v253, 1.442695
    %v255 = vpow.pop %v254
    %v256 = vadd.f32 %v255, 1.0
    %v257 = vlog2.pop %v256
    %v258 = vmul.f32 %v257, 0.6931472
    %v259 = vmul.f32 -0.5, %v255
    %v260 = vadd.f32 %v259, 1.0
    %v261 = vmul.f32 %v260, %v255
    %v262 = vand.u32 2147483647, %v255
    %vm263 = vcmp.lt.f32.partialorder %v262, 0.0004427343
    %v264 = vsel %vm263, %v261, %v258
    %v265 = vadd.f32 %v251, %v264
    %v266 = vsel %vm250, 1, 0
    %vm267 = vcmp.eq.s32.totalorder %v266, 1
    %v268 = vsel %vm267, %v265, %v241
    %269 = vst [vmem:[%s7] sm:$0xff] %v268
    // Predicated region
    $region34: #{_forward_impl.1} parent=1 // pred_check
      _
    $region35: #{_forward_impl.1} parent=1 // pred_check_branch
      %271 = sbr.rel (0) target = $region37
    $region36: #{_forward_impl.1} parent=1 // pred_region
      _
    $region37: #{_forward_impl.1} parent=1 // pred_fallthru
      _
    // Predicated region
    $region38: #{_forward_impl.1} parent=1 // pred_check
      _
    $region39: #{_forward_impl.1} parent=1 // pred_check_branch
      %273 = sbr.rel (0) target = $region41
    $region40: #{_forward_impl.1} parent=1 // pred_region
      _
    $region41: #{_forward_impl.1} parent=1 // pred_fallthru
      _
    %274 = vsyncpa [#allocation3], 1

</llo_original>
